<compile_context>
chip_gen: v7x
topology: tpu7x:2x2x1
jax: 0.10.0
libtpu: 0.0.40
codegen_flags: <defaults>
</compile_context>

<pallas_src>
import jax
import jax.numpy as jnp
from jax.experimental import pallas as pl
from jax.experimental.pallas import tpu as pltpu

# ----- configuration (mirrors the PyTorch `configuration` dict) -----
CFG = dict(
    nr_layers=3,
    nr_initial_features=7,
    layer1_units=32,
    layer2_units=32,
    layer3_units=16,
    flattened_params_units=64,   # width of the pre-flattened state-dict tensor (GNN stand-in input)
    gmn_nr_channels=8,           # GNN output channels (weights-branch features)
    cnn_nr_channels=4,
    cnn_kernel_size=3,
    hidden_dim=32,               # GNN-only hyper-params; unused here (see TODO above)
    num_gnn_layers=2,
    use_cnn=True,
    use_weights=True,
)

LEAKY_SLOPE = 0.01   # nn.LeakyReLU default
BN_EPS = 1e-5        # nn.BatchNorm1d default
LANES = 128


def _leaky(v):
    # LeakyReLU(0.01): one VPU max instead of compare+select.
    return jnp.maximum(v, LEAKY_SLOPE * v)


def _round_up(n, m):
    return -(-n // m) * m


# ---------------------------------------------------------------------------
# host-side weight packing: one contiguous (R_w, 128) f32 slab for all dense params
# ---------------------------------------------------------------------------
def pack_params(params, cfg, B):
    U1, U2 = cfg['layer1_units'], cfg['layer2_units']
    P, S = cfg['flattened_params_units'], cfg['gmn_nr_channels']
    C, K = cfg['cnn_nr_channels'], cfg['cnn_kernel_size']
    CPAD = _round_up(C, 8)
    w3 = jnp.asarray(params['w3'], jnp.float32)

    def rep(v):
        # replicate a (1, c) row vector to B sublanes -> plain (B, c) add in-kernel
        v = jnp.asarray(v, jnp.float32).reshape(1, -1)
        return jnp.broadcast_to(v, (B, v.shape[1]))

    # (name, array, alloc_rows, read_rows, read_cols)
    entries = [
        # contraction rows padded to 128 so activations are read as full 128-lane tiles
        ('w1',  jnp.asarray(params['w1'], jnp.float32),  LANES, LANES, U1),
        ('wfp', jnp.asarray(params['wfp'], jnp.float32), LANES, LANES, S),
        ('w2',  jnp.asarray(params['w2'], jnp.float32),  U1,    U1,    U2),
        # fc3 weight split row-wise; read full 128 lanes -> lane-dense (B,128) output tile
        ('w3h', w3[:U2, :],              U2,   U2,   LANES),
        ('w3c', w3[U2:U2 + C, :],        CPAD, CPAD, LANES),
        ('w3s', w3[U2 + C:, :],          _round_up(S, 8), S, LANES),
        # biases / BN affine params, replicated to B sublanes
        ('b1',  rep(params['b1']),  B, B, U1),
        ('g1',  rep(params['g1']),  B, B, U1),
        ('be1', rep(params['be1']), B, B, U1),
        ('b2',  rep(params['b2']),  B, B, U2),
        ('g2',  rep(params['g2']),  B, B, U2),
        ('be2', rep(params['be2']), B, B, U2),
        ('bfp', rep(params['bfp']), B, B, S),
        ('b3',  rep(params['b3']),  B, B, LANES),
    ]

    layout = {}
    row = 0
    for name, arr, alloc, read_rows, read_cols in entries:
        row = _round_up(row, 8)                 # keep every block on a sublane-tile boundary
        layout[name] = (row, read_rows, read_cols)
        row += alloc
    total = _round_up(row, 8)

    slab = jnp.zeros((total, LANES), jnp.float32)
    for name, arr, alloc, read_rows, read_cols in entries:
        r0 = layout[name][0]
        r, c = arr.shape
        slab = slab.at[r0:r0 + r, :c].set(arr)

    # Conv1d taps + bias as one tiny 1-D SMEM table: [w(c,0..K-1), b(c)] per channel
    conv_tbl = jnp.concatenate(
        [jnp.asarray(params['conv_w'], jnp.float32),
         jnp.asarray(params['conv_b'], jnp.float32).reshape(C, 1)],
        axis=1).reshape(-1)                     # f32[C*(K+1)]
    return slab, layout, conv_tbl, B


# ---------------------------------------------------------------------------
# host-side activation packing: one (G, R_act, 128) slab per call
#   rows [0, B)        : cat(x, budgets)          (lanes >= Fin are zero)
#   rows [B, 2B)       : flattened state-dict     (lanes >= P   are zero)
#   rows [(2+k)B,(3+k)B): learning curve shifted by k (lanes >= Lout are zero)
# ---------------------------------------------------------------------------
def pack_activations(x, budgets, learning_curves, flat_params, cfg):
    G, B, F0 = x.shape
    L = learning_curves.shape[-1]
    K = cfg['cnn_kernel_size']
    P = cfg['flattened_params_units']
    Lout = L - K + 1

    xb = jnp.concatenate(
        [x.astype(jnp.float32), budgets.astype(jnp.float32)[..., None]], axis=-1)

    slab = jnp.zeros((G, (2 + K) * B, LANES), jnp.float32)
    slab = slab.at[:, 0:B, :F0 + 1].set(xb)
    slab = slab.at[:, B:2 * B, :P].set(flat_params.astype(jnp.float32))
    lc = learning_curves.astype(jnp.float32)
    for k in range(K):
        slab = slab.at[:, (2 + k) * B:(3 + k) * B, :Lout].set(lc[:, :, k:k + Lout])
    return slab


# ---------------------------------------------------------------------------
# kernel
# ---------------------------------------------------------------------------
def _make_kernel(w_layout, cfg, B, Lout):
    C, K = cfg['cnn_nr_channels'], cfg['cnn_kernel_size']
    CPAD = _round_up(C, 8)
    inv_b = 1.0 / float(B)

    def kernel(act_ref, w_ref, cw_ref, o_ref):
        def W(name):
            r0, rr, rc = w_layout[name]
            return w_ref[r0:r0 + rr, 0:rc]

        def bn_train(v, gamma, beta):
            # BatchNorm1d training mode, biased variance, single pass; clamp guards f32
            # cancellation (var = E[x^2] - mu^2 can go slightly negative).
            s = jnp.sum(v, axis=0, keepdims=True)
            ss = jnp.sum(v * v, axis=0, keepdims=True)
            mu = s * inv_b
            var = jnp.maximum(ss * inv_b - mu * mu, 0.0)
            return (v - mu) * jax.lax.rsqrt(var + BN_EPS) * gamma + beta

        # fc1 / bn1 / act on cat(x, budgets); xb read as full 128-lane tile vs zero-row-padded w1
        xb = act_ref[0:B, :]                                        # (B, 128)
        h = jnp.dot(xb, W('w1'), preferred_element_type=jnp.float32) + W('b1')
        h = _leaky(bn_train(h, W('g1'), W('be1')))

        # fc2 / bn2 / act  (nr_layers = 3 -> single intermediate layer)
        h = jnp.dot(h, W('w2'), preferred_element_type=jnp.float32) + W('b2')
        h = _leaky(bn_train(h, W('g2'), W('be2')))

        # weights branch (GNN stand-in): Linear(flattened params -> gmn channels)
        fp = act_ref[B:2 * B, :]                                    # (B, 128)
        sd = jnp.dot(fp, W('wfp'), preferred_element_type=jnp.float32) + W('bfp')  # (B, S)

        # CNN branch: Conv1d(1 -> C, kernel=K) + AdaptiveMaxPool1d(1)
        # shifted learning-curve views were produced host-side -> static row slices only
        shifts = [act_ref[(2 + k) * B:(3 + k) * B, 0:Lout] for k in range(K)]
        col = jax.lax.broadcasted_iota(jnp.int32, (B, CPAD), 1)
        lc_feat = jnp.zeros((B, CPAD), jnp.float32)
        for c in range(C):
            acc = shifts[0] * cw_ref[c * (K + 1)]
            for k in range(1, K):
                acc = acc + shifts[k] * cw_ref[c * (K + 1) + k]
            # conv bias is a per-channel constant -> adding after the max is equivalent
            chan = jnp.max(acc, axis=1, keepdims=True) + cw_ref[c * (K + 1) + K]   # (B, 1)
            # place channel c into lane c (one-hot select; avoids an in-kernel lane concat)
            lc_feat = lc_feat + jnp.where(col == c, chan, 0.0)

        # fc3 over cat(h, lc_feat, sd): fc3 weight split row-wise -> three matmuls.
        # Weight/bias columns beyond U3 are zero in the slab, so `out` is a full lane-dense
        # (B, 128) tile (unmasked store); wrapper slices [:, :U3].
        out = (jnp.dot(h, W('w3h'), preferred_element_type=jnp.float32)
               + jnp.dot(lc_feat, W('w3c'), preferred_element_type=jnp.float32)
               + jnp.dot(sd, W('w3s'), preferred_element_type=jnp.float32)
               + W('b3'))
        o_ref[...] = _leaky(out)

    return kernel


# ---------------------------------------------------------------------------
# wrapper: one pallas_call over G independent groups of B samples
# ---------------------------------------------------------------------------
def gmn_feature_extractor_pallas(packed, x, budgets, learning_curves, flat_params, cfg):
    assert cfg['nr_layers'] == 3, "kernel is specialized to the 3-layer configuration"
    w_slab, w_layout, conv_tbl, Bp = packed
    G, B, F0 = x.shape
    assert B == Bp, "batch size per group must match the packed bias replication"
    L = learning_curves.shape[-1]
    U1, U2, U3 = cfg['layer1_units'], cfg['layer2_units'], cfg['layer3_units']
    P, S = cfg['flattened_params_units'], cfg['gmn_nr_channels']
    C, K = cfg['cnn_nr_channels'], cfg['cnn_kernel_size']
    Lout = L - K + 1

    act = pack_activations(x, budgets, learning_curves, flat_params, cfg)  # (G, R_act, 128)
    R_act = act.shape[1]
    R_w = w_slab.shape[0]

    flops = 2 * G * B * ((F0 + 1) * U1 + U1 * U2 + P * S
                         + (U2 + C + S) * U3 + C * K * Lout)
    bytes_accessed = (int(act.size) + int(w_slab.size) + int(conv_tbl.size)
                      + G * B * LANES) * 4

    out = pl.pallas_call(
        _make_kernel(w_layout, cfg, B, Lout),
        out_shape=jax.ShapeDtypeStruct((G, B, LANES), jnp.float32),
        grid=(G,),
        in_specs=[
            # per-group activation slab: one DMA per grid step
            pl.BlockSpec((None, R_act, LANES), lambda g: (g, 0, 0)),
            # weight slab: constant block index -> stays VMEM-resident across grid steps
            pl.BlockSpec((R_w, LANES), lambda g: (0, 0)),
            # tiny conv tap/bias table, whole array in SMEM
            pl.BlockSpec(memory_space=pltpu.MemorySpace.SMEM),
        ],
        out_specs=pl.BlockSpec((None, B, LANES), lambda g: (g, 0, 0)),
        compiler_params=pltpu.CompilerParams(
            dimension_semantics=("parallel",)),      # shard groups across TCs on v7x
        cost_estimate=pl.CostEstimate(flops=flops,
                                      transcendentals=G * (U1 + U2),
                                      bytes_accessed=bytes_accessed),
    )(act, w_slab, conv_tbl)

    return out[:, :, :U3]


# ---------------------------------------------------------------------------
# parameter construction + plain-JAX reference
# ---------------------------------------------------------------------------
def build_params(key, cfg):
    F0 = cfg['nr_initial_features']
    Fin = F0 + 1
    U1, U2, U3 = cfg['layer1_units'], cfg['layer2_units'], cfg['layer3_units']
    P, S = cfg['flattened_params_units'], cfg['gmn_nr_channels']
    C, K = cfg['cnn_nr_channels'], cfg['cnn_kernel_size']
    ks = jax.random.split(key, 10)

    def dense(k, fan_in, fan_out):
        lim = 1.0 / float(fan_in) ** 0.5
        kw, kb = jax.random.split(k)
        w = jax.random.uniform(kw, (fan_in, fan_out), jnp.float32, -lim, lim)
        b = jax.random.uniform(kb, (1, fan_out), jnp.float32, -lim, lim)
        return w, b

    w1, b1 = dense(ks[0], Fin, U1)
    w2, b2 = dense(ks[1], U1, U2)
    wfp, bfp = dense(ks[2], P, S)
    w3, b3 = dense(ks[3], U2 + C + S, U3)
    lim_c = 1.0 / float(K) ** 0.5
    conv_w = jax.random.uniform(ks[4], (C, K), jnp.float32, -lim_c, lim_c)
    conv_b = jax.random.uniform(ks[5], (C,), jnp.float32, -lim_c, lim_c)
    g1 = 1.0 + 0.1 * jax.random.normal(ks[6], (1, U1), jnp.float32)
    be1 = 0.1 * jax.random.normal(ks[7], (1, U1), jnp.float32)
    g2 = 1.0 + 0.1 * jax.random.normal(ks[8], (1, U2), jnp.float32)
    be2 = 0.1 * jax.random.normal(ks[9], (1, U2), jnp.float32)
    return dict(w1=w1, b1=b1, g1=g1, be1=be1, w2=w2, b2=b2, g2=g2, be2=be2,
                wfp=wfp, bfp=bfp, w3=w3, b3=b3, conv_w=conv_w, conv_b=conv_b)


def _batchnorm_ref(v, gamma, beta):
    mu = jnp.mean(v, axis=0, keepdims=True)
    var = jnp.mean((v - mu) ** 2, axis=0, keepdims=True)
    return (v - mu) * jax.lax.rsqrt(var + BN_EPS) * gamma + beta


def reference_forward(params, x, budgets, learning_curves, flat_params, cfg):
    """Plain-JAX replica of the PyTorch forward (training-mode BatchNorm), one group."""
    C, K = cfg['cnn_nr_channels'], cfg['cnn_kernel_size']
    xb = jnp.concatenate([x, budgets.reshape(-1, 1)], axis=1)
    h = _leaky(_batchnorm_ref(xb @ params['w1'] + params['b1'],
                              params['g1'], params['be1']))
    h = _leaky(_batchnorm_ref(h @ params['w2'] + params['b2'],
                              params['g2'], params['be2']))
    L = learning_curves.shape[1]
    Lout = L - K + 1
    chans = []
    for c in range(C):
        acc = jnp.zeros((x.shape[0], Lout), jnp.float32)
        for k in range(K):
            acc = acc + learning_curves[:, k:k + Lout] * params['conv_w'][c, k]
        chans.append(jnp.max(acc + params['conv_b'][c], axis=1, keepdims=True))
    lc_feat = jnp.concatenate(chans, axis=1)                       # (B, C)
    sd_feat = flat_params @ params['wfp'] + params['bfp']          # (B, S)
    cat = jnp.concatenate([h, lc_feat, sd_feat], axis=1)
    return _leaky(cat @ params['w3'] + params['b3'])


if __name__ == "__main__":
    cfg = CFG
    G = 4    # independent groups (each == one module forward call) batched per pallas_call
    B = 8    # batch per group (BatchNorm statistics are per group, as in the module)
    L = 16   # learning-curve length

    key = jax.random.PRNGKey(0)
    k_par, k_x, k_b, k_lc, k_fp = jax.random.split(key, 5)
    params = build_params(k_par, cfg)
    packed = pack_params(params, cfg, B)      # one-time host-side weight packing

    x = jax.random.normal(k_x, (G, B, cfg['nr_initial_features']), jnp.float32)
    budgets = jax.random.uniform(k_b, (G, B), jnp.float32, 0.0, 1.0)
    learning_curves = jax.random.uniform(k_lc, (G, B, L), jnp.float32, 0.0, 1.0)
    flat_params = jax.random.normal(k_fp, (G, B, cfg['flattened_params_units']), jnp.float32)

    out = gmn_feature_extractor_pallas(packed, x, budgets, learning_curves, flat_params, cfg)
    out = jax.block_until_ready(out)

    ref = jnp.stack([
        reference_forward(params, x[g], budgets[g], learning_curves[g], flat_params[g], cfg)
        for g in range(G)])
    assert out.shape == (G, B, cfg['layer3_units'])
    assert jnp.allclose(out, ref, rtol=1e-3, atol=1e-3), "mismatch vs plain-JAX reference"

    print("KERNEL_OK")
</pallas_src>

<mosaic_0001>
module attributes {stable_mosaic.version = 11 : i64} {
  func.func @kernel(%arg0: i32, %arg1: memref<1x40x128xf32, #tpu.memory_space<vmem>>, %arg2: memref<400x128xf32, #tpu.memory_space<vmem>>, %arg3: memref<16xf32, #tpu.memory_space<smem>>, %arg4: memref<1x8x128xf32, #tpu.memory_space<vmem>>) attributes {dimension_semantics = [#tpu.dimension_semantics<parallel>], iteration_bounds = array<i64: 4>, scalar_prefetch = 0 : i64, scratch_operands = 0 : i64, tpu.core_type = #tpu.core_type<tc>, window_params = [{transform_indices = @transform_0, window_bounds = array<i64: 1, 40, 128>}, {pipeline_mode = #tpu.pipeline_mode<synchronous>, transform_indices = @transform_1, window_bounds = array<i64: 400, 128>}, {transform_indices = @transform_2, window_bounds = array<i64: 16>}, {transform_indices = @transform_3, window_bounds = array<i64: 1, 8, 128>}]} {
    %c0 = arith.constant 0 : index
    %c0_0 = arith.constant 0 : index
    %c0_1 = arith.constant 0 : index
    %0 = vector.load %arg1[%c0, %c0_0, %c0_1] : memref<1x40x128xf32, #tpu.memory_space<vmem>>, vector<1x8x128xf32>
    %1 = vector.shape_cast %0 : vector<1x8x128xf32> to vector<8x128xf32>
    %c0_2 = arith.constant 0 : index
    %c0_3 = arith.constant 0 : index
    %2 = vector.load %arg2[%c0_2, %c0_3] : memref<400x128xf32, #tpu.memory_space<vmem>>, vector<128x32xf32>
    %cst = arith.constant dense<0.000000e+00> : vector<8x32xf32>
    %3 = tpu.matmul %1, %2, %cst {dimension_numbers = #tpu.dot_dimension_numbers<[1], [0], [0], [1], [0, 0, 1, 1], [], []>} : vector<8x128xf32>, vector<128x32xf32>, vector<8x32xf32> -> vector<8x32xf32>
    %c336 = arith.constant 336 : index
    %c0_4 = arith.constant 0 : index
    %4 = vector.load %arg2[%c336, %c0_4] : memref<400x128xf32, #tpu.memory_space<vmem>>, vector<8x32xf32>
    %5 = arith.addf %3, %4 : vector<8x32xf32>
    %c344 = arith.constant 344 : index
    %c0_5 = arith.constant 0 : index
    %6 = vector.load %arg2[%c344, %c0_5] : memref<400x128xf32, #tpu.memory_space<vmem>>, vector<8x32xf32>
    %c352 = arith.constant 352 : index
    %c0_6 = arith.constant 0 : index
    %7 = vector.load %arg2[%c352, %c0_6] : memref<400x128xf32, #tpu.memory_space<vmem>>, vector<8x32xf32>
    %cst_7 = arith.constant dense<0.000000e+00> : vector<32xf32>
    %8 = vector.multi_reduction <add>, %5, %cst_7 [0] : vector<8x32xf32> to vector<32xf32>
    %9 = vector.shape_cast %8 : vector<32xf32> to vector<1x32xf32>
    %10 = arith.mulf %5, %5 : vector<8x32xf32>
    %cst_8 = arith.constant dense<0.000000e+00> : vector<32xf32>
    %11 = vector.multi_reduction <add>, %10, %cst_8 [0] : vector<8x32xf32> to vector<32xf32>
    %12 = vector.shape_cast %11 : vector<32xf32> to vector<1x32xf32>
    %cst_9 = arith.constant 1.250000e-01 : f32
    %13 = vector.broadcast %cst_9 : f32 to vector<1x32xf32>
    %14 = arith.mulf %9, %13 : vector<1x32xf32>
    %cst_10 = arith.constant 1.250000e-01 : f32
    %15 = vector.broadcast %cst_10 : f32 to vector<1x32xf32>
    %16 = arith.mulf %12, %15 : vector<1x32xf32>
    %17 = arith.mulf %14, %14 : vector<1x32xf32>
    %18 = arith.subf %16, %17 : vector<1x32xf32>
    %cst_11 = arith.constant 0.000000e+00 : f32
    %19 = vector.broadcast %cst_11 : f32 to vector<1x32xf32>
    %20 = arith.maximumf %18, %19 : vector<1x32xf32>
    %21 = vector.broadcast %14 : vector<1x32xf32> to vector<8x32xf32>
    %22 = arith.subf %5, %21 : vector<8x32xf32>
    %cst_12 = arith.constant 9.99999974E-6 : f32
    %23 = vector.broadcast %cst_12 : f32 to vector<1x32xf32>
    %24 = arith.addf %20, %23 : vector<1x32xf32>
    %25 = math.rsqrt %24 : vector<1x32xf32>
    %26 = vector.broadcast %25 : vector<1x32xf32> to vector<8x32xf32>
    %27 = arith.mulf %22, %26 : vector<8x32xf32>
    %28 = arith.mulf %27, %6 : vector<8x32xf32>
    %29 = arith.addf %28, %7 : vector<8x32xf32>
    %cst_13 = arith.constant 0.00999999977 : f32
    %30 = vector.broadcast %cst_13 : f32 to vector<8x32xf32>
    %31 = arith.mulf %30, %29 : vector<8x32xf32>
    %32 = arith.maximumf %29, %31 : vector<8x32xf32>
    %c256 = arith.constant 256 : index
    %c0_14 = arith.constant 0 : index
    %33 = vector.load %arg2[%c256, %c0_14] : memref<400x128xf32, #tpu.memory_space<vmem>>, vector<32x32xf32>
    %cst_15 = arith.constant dense<0.000000e+00> : vector<8x32xf32>
    %34 = tpu.matmul %32, %33, %cst_15 {dimension_numbers = #tpu.dot_dimension_numbers<[1], [0], [0], [1], [0, 0, 1, 1], [], []>} : vector<8x32xf32>, vector<32x32xf32>, vector<8x32xf32> -> vector<8x32xf32>
    %c360 = arith.constant 360 : index
    %c0_16 = arith.constant 0 : index
    %35 = vector.load %arg2[%c360, %c0_16] : memref<400x128xf32, #tpu.memory_space<vmem>>, vector<8x32xf32>
    %36 = arith.addf %34, %35 : vector<8x32xf32>
    %c368 = arith.constant 368 : index
    %c0_17 = arith.constant 0 : index
    %37 = vector.load %arg2[%c368, %c0_17] : memref<400x128xf32, #tpu.memory_space<vmem>>, vector<8x32xf32>
    %c376 = arith.constant 376 : index
    %c0_18 = arith.constant 0 : index
    %38 = vector.load %arg2[%c376, %c0_18] : memref<400x128xf32, #tpu.memory_space<vmem>>, vector<8x32xf32>
    %cst_19 = arith.constant dense<0.000000e+00> : vector<32xf32>
    %39 = vector.multi_reduction <add>, %36, %cst_19 [0] : vector<8x32xf32> to vector<32xf32>
    %40 = vector.shape_cast %39 : vector<32xf32> to vector<1x32xf32>
    %41 = arith.mulf %36, %36 : vector<8x32xf32>
    %cst_20 = arith.constant dense<0.000000e+00> : vector<32xf32>
    %42 = vector.multi_reduction <add>, %41, %cst_20 [0] : vector<8x32xf32> to vector<32xf32>
    %43 = vector.shape_cast %42 : vector<32xf32> to vector<1x32xf32>
    %cst_21 = arith.constant 1.250000e-01 : f32
    %44 = vector.broadcast %cst_21 : f32 to vector<1x32xf32>
    %45 = arith.mulf %40, %44 : vector<1x32xf32>
    %cst_22 = arith.constant 1.250000e-01 : f32
    %46 = vector.broadcast %cst_22 : f32 to vector<1x32xf32>
    %47 = arith.mulf %43, %46 : vector<1x32xf32>
    %48 = arith.mulf %45, %45 : vector<1x32xf32>
    %49 = arith.subf %47, %48 : vector<1x32xf32>
    %cst_23 = arith.constant 0.000000e+00 : f32
    %50 = vector.broadcast %cst_23 : f32 to vector<1x32xf32>
    %51 = arith.maximumf %49, %50 : vector<1x32xf32>
    %52 = vector.broadcast %45 : vector<1x32xf32> to vector<8x32xf32>
    %53 = arith.subf %36, %52 : vector<8x32xf32>
    %cst_24 = arith.constant 9.99999974E-6 : f32
    %54 = vector.broadcast %cst_24 : f32 to vector<1x32xf32>
    %55 = arith.addf %51, %54 : vector<1x32xf32>
    %56 = math.rsqrt %55 : vector<1x32xf32>
    %57 = vector.broadcast %56 : vector<1x32xf32> to vector<8x32xf32>
    %58 = arith.mulf %53, %57 : vector<8x32xf32>
    %59 = arith.mulf %58, %37 : vector<8x32xf32>
    %60 = arith.addf %59, %38 : vector<8x32xf32>
    %cst_25 = arith.constant 0.00999999977 : f32
    %61 = vector.broadcast %cst_25 : f32 to vector<8x32xf32>
    %62 = arith.mulf %61, %60 : vector<8x32xf32>
    %63 = arith.maximumf %60, %62 : vector<8x32xf32>
    %c0_26 = arith.constant 0 : index
    %c8 = arith.constant 8 : index
    %c0_27 = arith.constant 0 : index
    %64 = vector.load %arg1[%c0_26, %c8, %c0_27] : memref<1x40x128xf32, #tpu.memory_space<vmem>>, vector<1x8x128xf32>
    %65 = vector.shape_cast %64 : vector<1x8x128xf32> to vector<8x128xf32>
    %c128 = arith.constant 128 : index
    %c0_28 = arith.constant 0 : index
    %66 = vector.load %arg2[%c128, %c0_28] : memref<400x128xf32, #tpu.memory_space<vmem>>, vector<128x8xf32>
    %cst_29 = arith.constant dense<0.000000e+00> : vector<8x8xf32>
    %67 = tpu.matmul %65, %66, %cst_29 {dimension_numbers = #tpu.dot_dimension_numbers<[1], [0], [0], [1], [0, 0, 1, 1], [], []>} : vector<8x128xf32>, vector<128x8xf32>, vector<8x8xf32> -> vector<8x8xf32>
    %c384 = arith.constant 384 : index
    %c0_30 = arith.constant 0 : index
    %68 = vector.load %arg2[%c384, %c0_30] : memref<400x128xf32, #tpu.memory_space<vmem>>, vector<8x8xf32>
    %69 = arith.addf %67, %68 : vector<8x8xf32>
    %c0_31 = arith.constant 0 : index
    %c16 = arith.constant 16 : index
    %c0_32 = arith.constant 0 : index
    %70 = vector.load %arg1[%c0_31, %c16, %c0_32] : memref<1x40x128xf32, #tpu.memory_space<vmem>>, vector<1x8x14xf32>
    %71 = vector.shape_cast %70 : vector<1x8x14xf32> to vector<8x14xf32>
    %c0_33 = arith.constant 0 : index
    %c24 = arith.constant 24 : index
    %c0_34 = arith.constant 0 : index
    %72 = vector.load %arg1[%c0_33, %c24, %c0_34] : memref<1x40x128xf32, #tpu.memory_space<vmem>>, vector<1x8x14xf32>
    %73 = vector.shape_cast %72 : vector<1x8x14xf32> to vector<8x14xf32>
    %c0_35 = arith.constant 0 : index
    %c32 = arith.constant 32 : index
    %c0_36 = arith.constant 0 : index
    %74 = vector.load %arg1[%c0_35, %c32, %c0_36] : memref<1x40x128xf32, #tpu.memory_space<vmem>>, vector<1x8x14xf32>
    %75 = vector.shape_cast %74 : vector<1x8x14xf32> to vector<8x14xf32>
    %76 = tpu.iota {dimensions = array<i32: 1>} : vector<8x8xi32>
    %cst_37 = arith.constant 0.000000e+00 : f32
    %77 = vector.broadcast %cst_37 : f32 to vector<8x8xf32>
    %c0_38 = arith.constant 0 : index
    %78 = memref.load %arg3[%c0_38] : memref<16xf32, #tpu.memory_space<smem>>
    %79 = vector.broadcast %78 : f32 to vector<8x14xf32>
    %80 = arith.mulf %71, %79 : vector<8x14xf32>
    %c1 = arith.constant 1 : index
    %81 = memref.load %arg3[%c1] : memref<16xf32, #tpu.memory_space<smem>>
    %82 = vector.broadcast %81 : f32 to vector<8x14xf32>
    %83 = arith.mulf %73, %82 : vector<8x14xf32>
    %84 = arith.addf %80, %83 : vector<8x14xf32>
    %c2 = arith.constant 2 : index
    %85 = memref.load %arg3[%c2] : memref<16xf32, #tpu.memory_space<smem>>
    %86 = vector.broadcast %85 : f32 to vector<8x14xf32>
    %87 = arith.mulf %75, %86 : vector<8x14xf32>
    %88 = arith.addf %84, %87 : vector<8x14xf32>
    %cst_39 = arith.constant dense<0xFF800000> : vector<8xf32>
    %89 = vector.multi_reduction <maximumf>, %88, %cst_39 [1] : vector<8x14xf32> to vector<8xf32>
    %90 = vector.shape_cast %89 : vector<8xf32> to vector<8x1xf32>
    %c3 = arith.constant 3 : index
    %91 = memref.load %arg3[%c3] : memref<16xf32, #tpu.memory_space<smem>>
    %92 = vector.broadcast %91 : f32 to vector<8x1xf32>
    %93 = arith.addf %90, %92 : vector<8x1xf32>
    %c0_i32 = arith.constant 0 : i32
    %94 = vector.broadcast %c0_i32 : i32 to vector<8x8xi32>
    %95 = arith.cmpi eq, %76, %94 : vector<8x8xi32>
    %cst_40 = arith.constant 0.000000e+00 : f32
    %96 = vector.shape_cast %93 : vector<8x1xf32> to vector<8x1xf32>
    %97 = vector.broadcast %96 : vector<8x1xf32> to vector<8x8xf32>
    %98 = vector.broadcast %cst_40 : f32 to vector<8x8xf32>
    %99 = arith.select %95, %97, %98 : vector<8x8xi1>, vector<8x8xf32>
    %100 = arith.addf %77, %99 : vector<8x8xf32>
    %c4 = arith.constant 4 : index
    %101 = memref.load %arg3[%c4] : memref<16xf32, #tpu.memory_space<smem>>
    %102 = vector.broadcast %101 : f32 to vector<8x14xf32>
    %103 = arith.mulf %71, %102 : vector<8x14xf32>
    %c5 = arith.constant 5 : index
    %104 = memref.load %arg3[%c5] : memref<16xf32, #tpu.memory_space<smem>>
    %105 = vector.broadcast %104 : f32 to vector<8x14xf32>
    %106 = arith.mulf %73, %105 : vector<8x14xf32>
    %107 = arith.addf %103, %106 : vector<8x14xf32>
    %c6 = arith.constant 6 : index
    %108 = memref.load %arg3[%c6] : memref<16xf32, #tpu.memory_space<smem>>
    %109 = vector.broadcast %108 : f32 to vector<8x14xf32>
    %110 = arith.mulf %75, %109 : vector<8x14xf32>
    %111 = arith.addf %107, %110 : vector<8x14xf32>
    %cst_41 = arith.constant dense<0xFF800000> : vector<8xf32>
    %112 = vector.multi_reduction <maximumf>, %111, %cst_41 [1] : vector<8x14xf32> to vector<8xf32>
    %113 = vector.shape_cast %112 : vector<8xf32> to vector<8x1xf32>
    %c7 = arith.constant 7 : index
    %114 = memref.load %arg3[%c7] : memref<16xf32, #tpu.memory_space<smem>>
    %115 = vector.broadcast %114 : f32 to vector<8x1xf32>
    %116 = arith.addf %113, %115 : vector<8x1xf32>
    %c1_i32 = arith.constant 1 : i32
    %117 = vector.broadcast %c1_i32 : i32 to vector<8x8xi32>
    %118 = arith.cmpi eq, %76, %117 : vector<8x8xi32>
    %cst_42 = arith.constant 0.000000e+00 : f32
    %119 = vector.shape_cast %116 : vector<8x1xf32> to vector<8x1xf32>
    %120 = vector.broadcast %119 : vector<8x1xf32> to vector<8x8xf32>
    %121 = vector.broadcast %cst_42 : f32 to vector<8x8xf32>
    %122 = arith.select %118, %120, %121 : vector<8x8xi1>, vector<8x8xf32>
    %123 = arith.addf %100, %122 : vector<8x8xf32>
    %c8_43 = arith.constant 8 : index
    %124 = memref.load %arg3[%c8_43] : memref<16xf32, #tpu.memory_space<smem>>
    %125 = vector.broadcast %124 : f32 to vector<8x14xf32>
    %126 = arith.mulf %71, %125 : vector<8x14xf32>
    %c9 = arith.constant 9 : index
    %127 = memref.load %arg3[%c9] : memref<16xf32, #tpu.memory_space<smem>>
    %128 = vector.broadcast %127 : f32 to vector<8x14xf32>
    %129 = arith.mulf %73, %128 : vector<8x14xf32>
    %130 = arith.addf %126, %129 : vector<8x14xf32>
    %c10 = arith.constant 10 : index
    %131 = memref.load %arg3[%c10] : memref<16xf32, #tpu.memory_space<smem>>
    %132 = vector.broadcast %131 : f32 to vector<8x14xf32>
    %133 = arith.mulf %75, %132 : vector<8x14xf32>
    %134 = arith.addf %130, %133 : vector<8x14xf32>
    %cst_44 = arith.constant dense<0xFF800000> : vector<8xf32>
    %135 = vector.multi_reduction <maximumf>, %134, %cst_44 [1] : vector<8x14xf32> to vector<8xf32>
    %136 = vector.shape_cast %135 : vector<8xf32> to vector<8x1xf32>
    %c11 = arith.constant 11 : index
    %137 = memref.load %arg3[%c11] : memref<16xf32, #tpu.memory_space<smem>>
    %138 = vector.broadcast %137 : f32 to vector<8x1xf32>
    %139 = arith.addf %136, %138 : vector<8x1xf32>
    %c2_i32 = arith.constant 2 : i32
    %140 = vector.broadcast %c2_i32 : i32 to vector<8x8xi32>
    %141 = arith.cmpi eq, %76, %140 : vector<8x8xi32>
    %cst_45 = arith.constant 0.000000e+00 : f32
    %142 = vector.shape_cast %139 : vector<8x1xf32> to vector<8x1xf32>
    %143 = vector.broadcast %142 : vector<8x1xf32> to vector<8x8xf32>
    %144 = vector.broadcast %cst_45 : f32 to vector<8x8xf32>
    %145 = arith.select %141, %143, %144 : vector<8x8xi1>, vector<8x8xf32>
    %146 = arith.addf %123, %145 : vector<8x8xf32>
    %c12 = arith.constant 12 : index
    %147 = memref.load %arg3[%c12] : memref<16xf32, #tpu.memory_space<smem>>
    %148 = vector.broadcast %147 : f32 to vector<8x14xf32>
    %149 = arith.mulf %71, %148 : vector<8x14xf32>
    %c13 = arith.constant 13 : index
    %150 = memref.load %arg3[%c13] : memref<16xf32, #tpu.memory_space<smem>>
    %151 = vector.broadcast %150 : f32 to vector<8x14xf32>
    %152 = arith.mulf %73, %151 : vector<8x14xf32>
    %153 = arith.addf %149, %152 : vector<8x14xf32>
    %c14 = arith.constant 14 : index
    %154 = memref.load %arg3[%c14] : memref<16xf32, #tpu.memory_space<smem>>
    %155 = vector.broadcast %154 : f32 to vector<8x14xf32>
    %156 = arith.mulf %75, %155 : vector<8x14xf32>
    %157 = arith.addf %153, %156 : vector<8x14xf32>
    %cst_46 = arith.constant dense<0xFF800000> : vector<8xf32>
    %158 = vector.multi_reduction <maximumf>, %157, %cst_46 [1] : vector<8x14xf32> to vector<8xf32>
    %159 = vector.shape_cast %158 : vector<8xf32> to vector<8x1xf32>
    %c15 = arith.constant 15 : index
    %160 = memref.load %arg3[%c15] : memref<16xf32, #tpu.memory_space<smem>>
    %161 = vector.broadcast %160 : f32 to vector<8x1xf32>
    %162 = arith.addf %159, %161 : vector<8x1xf32>
    %c3_i32 = arith.constant 3 : i32
    %163 = vector.broadcast %c3_i32 : i32 to vector<8x8xi32>
    %164 = arith.cmpi eq, %76, %163 : vector<8x8xi32>
    %cst_47 = arith.constant 0.000000e+00 : f32
    %165 = vector.shape_cast %162 : vector<8x1xf32> to vector<8x1xf32>
    %166 = vector.broadcast %165 : vector<8x1xf32> to vector<8x8xf32>
    %167 = vector.broadcast %cst_47 : f32 to vector<8x8xf32>
    %168 = arith.select %164, %166, %167 : vector<8x8xi1>, vector<8x8xf32>
    %169 = arith.addf %146, %168 : vector<8x8xf32>
    %c288 = arith.constant 288 : index
    %c0_48 = arith.constant 0 : index
    %170 = vector.load %arg2[%c288, %c0_48] : memref<400x128xf32, #tpu.memory_space<vmem>>, vector<32x128xf32>
    %cst_49 = arith.constant dense<0.000000e+00> : vector<8x128xf32>
    %171 = tpu.matmul %63, %170, %cst_49 {dimension_numbers = #tpu.dot_dimension_numbers<[1], [0], [0], [1], [0, 0, 1, 1], [], []>} : vector<8x32xf32>, vector<32x128xf32>, vector<8x128xf32> -> vector<8x128xf32>
    %c320 = arith.constant 320 : index
    %c0_50 = arith.constant 0 : index
    %172 = vector.load %arg2[%c320, %c0_50] : memref<400x128xf32, #tpu.memory_space<vmem>>, vector<8x128xf32>
    %cst_51 = arith.constant dense<0.000000e+00> : vector<8x128xf32>
    %173 = tpu.matmul %169, %172, %cst_51 {dimension_numbers = #tpu.dot_dimension_numbers<[1], [0], [0], [1], [0, 0, 1, 1], [], []>} : vector<8x8xf32>, vector<8x128xf32>, vector<8x128xf32> -> vector<8x128xf32>
    %174 = arith.addf %171, %173 : vector<8x128xf32>
    %c328 = arith.constant 328 : index
    %c0_52 = arith.constant 0 : index
    %175 = vector.load %arg2[%c328, %c0_52] : memref<400x128xf32, #tpu.memory_space<vmem>>, vector<8x128xf32>
    %cst_53 = arith.constant dense<0.000000e+00> : vector<8x128xf32>
    %176 = tpu.matmul %69, %175, %cst_53 {dimension_numbers = #tpu.dot_dimension_numbers<[1], [0], [0], [1], [0, 0, 1, 1], [], []>} : vector<8x8xf32>, vector<8x128xf32>, vector<8x128xf32> -> vector<8x128xf32>
    %177 = arith.addf %174, %176 : vector<8x128xf32>
    %c392 = arith.constant 392 : index
    %c0_54 = arith.constant 0 : index
    %178 = vector.load %arg2[%c392, %c0_54] : memref<400x128xf32, #tpu.memory_space<vmem>>, vector<8x128xf32>
    %179 = arith.addf %177, %178 : vector<8x128xf32>
    %cst_55 = arith.constant 0.00999999977 : f32
    %180 = vector.broadcast %cst_55 : f32 to vector<8x128xf32>
    %181 = arith.mulf %180, %179 : vector<8x128xf32>
    %182 = arith.maximumf %179, %181 : vector<8x128xf32>
    %c0_56 = arith.constant 0 : index
    %c0_57 = arith.constant 0 : index
    %c0_58 = arith.constant 0 : index
    %183 = vector.load %arg4[%c0_56, %c0_57, %c0_58] : memref<1x8x128xf32, #tpu.memory_space<vmem>>, vector<1x8x128xf32>
    %184 = vector.shape_cast %183 : vector<1x8x128xf32> to vector<8x128xf32>
    %185 = vector.shape_cast %182 : vector<8x128xf32> to vector<1x8x128xf32>
    tpu.vector_store %arg4[%c0_56, %c0_57, %c0_58], %185 {strides = array<i32>} : memref<1x8x128xf32, #tpu.memory_space<vmem>>, vector<1x8x128xf32>,
    return
  }
  func.func @transform_0(%arg0: i32) -> (i32, i32, i32) {
    %c0_i32 = arith.constant 0 : i32
    %c0_i32_0 = arith.constant 0 : i32
    %c0_i32_1 = arith.constant 0 : i32
    return %arg0, %c0_i32, %c0_i32_0 : i32, i32, i32
  }
  func.func @transform_1(%arg0: i32) -> (i32, i32) {
    %c0_i32 = arith.constant 0 : i32
    %c0_i32_0 = arith.constant 0 : i32
    %c0_i32_1 = arith.constant 0 : i32
    return %c0_i32, %c0_i32_0 : i32, i32
  }
  func.func @transform_2(%arg0: i32) -> i32 {
    %c0_i32 = arith.constant 0 : i32
    %c0_i32_0 = arith.constant 0 : i32
    return %c0_i32 : i32
  }
  func.func @transform_3(%arg0: i32) -> (i32, i32, i32) {
    %c0_i32 = arith.constant 0 : i32
    %c0_i32_0 = arith.constant 0 : i32
    %c0_i32_1 = arith.constant 0 : i32
    return %arg0, %c0_i32, %c0_i32_0 : i32, i32, i32
  }
}

</mosaic_0001>

<llo_original>
// kernel: tpu_custom_call.1
$region0: #{tpu_custom_call.1}
  #allocation0 [shape = 'u32[]', space=smem, size = 0x4, offset = 0x4, fixed_abs, tag = 'smem constant byte address 0x4 - core index']
  #allocation1 [shape = 'u32[144,128]{1,0:T(1,128)}', space=vmem, size = 0x12000, scoped, tag = 'internal scratch']
  %s0 = inlined_call_operand.hbm [shape: f32[4,40,128], index: 0, kind: input, shape index: {}]
  %s1 = inlined_call_operand.hbm [shape: f32[400,128], index: 1, kind: input, shape index: {}]
  %s2 = inlined_call_operand.vmem [shape: f32[16], index: 2, kind: input, shape index: {}]
  %s3 = inlined_call_operand.hbm [shape: f32[4,8,128], index: 3, kind: output, shape index: {}]
  %s4 = sld [smem:[#allocation0]]
  $region57: #{tpu_custom_call.1} parent=0
    _
  %s6 = ssub.s32 1, %s4
  %s7 = scalar_select 0, %s6, %s4
  $region1: #{tpu_custom_call.1} parent=0
    #allocation2 [shape = 'u8[40960]{0}', space=vmem, size = 0xa000, scoped, tag = 'input window, operand 0']
    #allocation3 [shape = 's32[2]{0}', space=sflag, size = 0x8, scoped, tag = 'scoped memory for tpu_custom_call.1']
    #allocation4 [shape = 's32[2]{0}', space=sflag, size = 0x8, scoped, tag = 'scoped memory for tpu_custom_call.1']
    #allocation5 [shape = 's32[2]{0}', space=sflag, size = 0x8, scoped, tag = 'scoped memory for tpu_custom_call.1']
    #allocation6 [shape = 'u8[204800]{0}', space=vmem, size = 0x32000, scoped, tag = 'input window, operand 1, single buffered']
    #allocation7 [shape = 's32[1]{0}', space=sflag, size = 0x4, scoped, tag = 'scoped memory for tpu_custom_call.1']
    #allocation8 [shape = 'u8[512]{0}', space=smem, size = 0x200, scoped, tag = 'input window, operand 2, single buffered']
    #allocation9 [shape = 'u8[8192]{0}', space=vmem, size = 0x2000, scoped, tag = 'output window, operand 0']
    %8 = vsyncpa [#allocation3], 0
    %s9 = scalar_lea.sflag [#allocation3], 1
    %10 = vsyncpa %s9, 0
    %11 = vsyncpa [#allocation7], 0
    %12 = vsyncpa [#allocation5], 0
    %13 = vsyncpa [#allocation4], 0
    %s14 = scalar_lea.sflag [#allocation4], 1
    %15 = vsyncpa %s14, 0
    loop: start=0, step=1, limit=6
    $region2: #{tpu_custom_call.1} parent=1 // loop_pre_header
      _
    $region3: #{tpu_custom_call.1} parent=1 // loop_header
      %s17 = sphi 0, %s21
      %p18 = scmp.ge.s32.totalorder %s17, 6
      %s27 = sphi 0, %s29
      %s30 = sphi 0, %s27
      %s31 = sphi 0, %s30
      %s47 = sphi 0, %s31
      %s51 = sphi 0, %s51
      %s53 = sphi 0, %s51
      %s54 = sphi 0, %s53
      %s68 = sphi 0, %s54
      %s72 = sphi 0, %s72
      %s74 = sphi 0, %s72
      %s75 = sphi 0, %s74
      %s89 = sphi 0, %s75
      %s95 = sphi 0, %s97
      %s98 = sphi 0, %s95
      %s99 = sphi 0, %s98
      %s115 = sphi 0, %s99
    $region4: #{tpu_custom_call.1} parent=1 // loop_header_branch
      %20 = sbr.rel (%p18) target = $region8
    $region5: #{tpu_custom_call.1} parent=1 // loop_body
      %s22 = ssub.s32 %s17, 1
      %s23 = ssub.s32 %s17, 2
      %s24 = sadd.s32 %s17, 1
      %s25 = ssub.s32 %s17, %s24
      %p26 = scmp.eq.s32.totalorder %s25, 0
      %s28 = sadd.s32 %s27, 1
      %s29 = scalar_select %p26, %s27, %s28
      %p32 = pneg %p26
      %p33 = scmp.eq.s32.totalorder %s17, 3
      %p34 = por %p32, %p33
      %p35 = scmp.ne.s32.totalorder %s27, %s30
      %p36 = scmp.eq.s32.totalorder %s17, 0
      %p37 = por %p35, %p36
      %p38 = scmp.ne.s32.totalorder %s27, %s30
      %p39 = scmp.eq.s32.totalorder %s22, 3
      %p40 = por %p38, %p39
      %p41 = scmp.ne.s32.totalorder %s30, %s31
      %p42 = scmp.eq.s32.totalorder %s22, 0
      %p43 = por %p41, %p42
      %p44 = scmp.ne.s32.totalorder %s30, %s31
      %p45 = scmp.eq.s32.totalorder %s23, 3
      %p46 = por %p44, %p45
      %p48 = scmp.ne.s32.totalorder %s31, %s47
      %p49 = scmp.eq.s32.totalorder %s23, 0
      %p50 = por %p48, %p49
      %s52 = sadd.s32 %s51, 1
      %p55 = scmp.eq.s32.totalorder %s17, 3
      %p56 = scmp.ne.s32.totalorder %s51, %s53
      %p57 = scmp.eq.s32.totalorder %s17, 0
      %p58 = por %p56, %p57
      %p59 = scmp.ne.s32.totalorder %s51, %s53
      %p60 = scmp.eq.s32.totalorder %s22, 3
      %p61 = por %p59, %p60
      %p62 = scmp.ne.s32.totalorder %s53, %s54
      %p63 = scmp.eq.s32.totalorder %s22, 0
      %p64 = por %p62, %p63
      %p65 = scmp.ne.s32.totalorder %s53, %s54
      %p66 = scmp.eq.s32.totalorder %s23, 3
      %p67 = por %p65, %p66
      %p69 = scmp.ne.s32.totalorder %s54, %s68
      %p70 = scmp.eq.s32.totalorder %s23, 0
      %p71 = por %p69, %p70
      %s73 = sadd.s32 %s72, 1
      %p76 = scmp.eq.s32.totalorder %s17, 3
      %p77 = scmp.ne.s32.totalorder %s72, %s74
      %p78 = scmp.eq.s32.totalorder %s17, 0
      %p79 = por %p77, %p78
      %p80 = scmp.ne.s32.totalorder %s72, %s74
      %p81 = scmp.eq.s32.totalorder %s22, 3
      %p82 = por %p80, %p81
      %p83 = scmp.ne.s32.totalorder %s74, %s75
      %p84 = scmp.eq.s32.totalorder %s22, 0
      %p85 = por %p83, %p84
      %p86 = scmp.ne.s32.totalorder %s74, %s75
      %p87 = scmp.eq.s32.totalorder %s23, 3
      %p88 = por %p86, %p87
      %p90 = scmp.ne.s32.totalorder %s75, %s89
      %p91 = scmp.eq.s32.totalorder %s23, 0
      %p92 = por %p90, %p91
      %s93 = ssub.s32 %s17, %s24
      %p94 = scmp.eq.s32.totalorder %s93, 0
      %s96 = sadd.s32 %s95, 1
      %s97 = scalar_select %p94, %s95, %s96
      %p100 = pneg %p94
      %p101 = scmp.eq.s32.totalorder %s17, 3
      %p102 = por %p100, %p101
      %p103 = scmp.ne.s32.totalorder %s95, %s98
      %p104 = scmp.eq.s32.totalorder %s17, 0
      %p105 = por %p103, %p104
      %p106 = scmp.ne.s32.totalorder %s95, %s98
      %p107 = scmp.eq.s32.totalorder %s22, 3
      %p108 = por %p106, %p107
      %p109 = scmp.ne.s32.totalorder %s98, %s99
      %p110 = scmp.eq.s32.totalorder %s22, 0
      %p111 = por %p109, %p110
      %p112 = scmp.ne.s32.totalorder %s98, %s99
      %p113 = scmp.eq.s32.totalorder %s23, 3
      %p114 = por %p112, %p113
      %p116 = scmp.ne.s32.totalorder %s99, %s115
      %p117 = scmp.eq.s32.totalorder %s23, 0
      %p118 = por %p116, %p117
      %p119 = scmp.le.s32.totalorder 1, %s17
      %p120 = scmp.lt.s32.totalorder %s17, 5
      %p121 = pnand %p119, %p120
      %p122 = pneg %p121
      // Predicated region
      $region9: #{tpu_custom_call.1} parent=5 // pred_check
        _
      $region10: #{tpu_custom_call.1} parent=5 // pred_check_branch
        %124 = sbr.rel (%p121) target = $region12
      $region11: #{tpu_custom_call.1} parent=5 // pred_region
        %s125 = ssub.s32 %s17, 1
        // Predicated region
        $region13: #{tpu_custom_call.1} parent=11 // pred_check
          %p126 = pneg %p64
        $region14: #{tpu_custom_call.1} parent=11 // pred_check_branch
          %128 = sbr.rel (%p126) target = $region16
        $region15: #{tpu_custom_call.1} parent=11 // pred_region
          %s130 = ssub.s32 6400, 6400
          %131 = vsyncadd [#allocation7], %s130
          %s132 = sshll.u32 [#allocation6], 4
          %s133 = int_to_ptr.vmem [resolvable:$true] %s132
          %138 = dma.hbm_to_vmem [thread:$0]  %s1, 6400, %s133, [#allocation7], 128, 128, 8
        $region16: #{tpu_custom_call.1} parent=11 // pred_fallthru
          _
        // Predicated region
        $region17: #{tpu_custom_call.1} parent=11 // pred_check
          %p139 = pneg %p85
        $region18: #{tpu_custom_call.1} parent=11 // pred_check_branch
          %141 = sbr.rel (%p139) target = $region20
        $region19: #{tpu_custom_call.1} parent=11 // pred_region
          %s143 = ssub.s32 16, 16
          %144 = vsyncadd [#allocation5], %s143
          %s146 = sshll.u32 %s2, 4
          %s147 = int_to_ptr.vmem [resolvable:$true] %s146
          %149 = dma.vmem_to_smem %s147, 16, [#allocation8], [#allocation5]
        $region20: #{tpu_custom_call.1} parent=11 // pred_fallthru
          _
      $region12: #{tpu_custom_call.1} parent=5 // pred_fallthru
        _
      %p150 = scmp.lt.s32.totalorder %s17, 4
      // Predicated region
      $region21: #{tpu_custom_call.1} parent=5 // pred_check
        %p151 = pneg %p150
      $region22: #{tpu_custom_call.1} parent=5 // pred_check_branch
        %153 = sbr.rel (%p151) target = $region24
      $region23: #{tpu_custom_call.1} parent=5 // pred_region
        // Predicated region
        $region25: #{tpu_custom_call.1} parent=23 // pred_check
          %p154 = pneg %p37
        $region26: #{tpu_custom_call.1} parent=23 // pred_check_branch
          %156 = sbr.rel (%p154) target = $region28
        $region27: #{tpu_custom_call.1} parent=23 // pred_region
          %s157 = sand.u32 %s27, 1
          %s158 = scalar_lea.sflag [#allocation3], %s157
          %s159 = sand.u32 %s27, 1
          %s160 = smul.addr %s159, 40
          %s161 = scalar_lea.vmem [#allocation2], %s160
          %s163 = ssub.s32 640, 640
          %164 = vsyncadd %s158, %s163
          %s165 = smul.addr %s17, 5
          %s166 = smul.addr %s165, 128
          %s167 = scalar_lea.hbm %s0, %s166
          %s168 = sshll.u32 %s161, 4
          %s169 = int_to_ptr.vmem [resolvable:$true] %s168
          %174 = dma.hbm_to_vmem [thread:$0]  %s167, 640, %s169, %s158, 128, 128, 8
        $region28: #{tpu_custom_call.1} parent=23 // pred_fallthru
          _
      $region24: #{tpu_custom_call.1} parent=5 // pred_fallthru
        _
      %p175 = scmp.le.s32.totalorder 1, %s17
      %p176 = scmp.lt.s32.totalorder %s17, 5
      %p177 = pnand %p175, %p176
      %p178 = pneg %p177
      // Predicated region
      $region29: #{tpu_custom_call.1} parent=5 // pred_check
        _
      $region30: #{tpu_custom_call.1} parent=5 // pred_check_branch
        %180 = sbr.rel (%p177) target = $region32
      $region31: #{tpu_custom_call.1} parent=5 // pred_region
        %s181 = ssub.s32 %s17, 1
        %s182 = sand.u32 %s30, 1
        %s183 = scalar_lea.sflag [#allocation3], %s182
        %s184 = sand.u32 %s30, 1
        %s185 = smul.addr %s184, 40
        %s186 = scalar_lea.vmem [#allocation2], %s185
        // Predicated region
        $region33: #{tpu_custom_call.1} parent=31 // pred_check
          %p187 = pneg %p43
        $region34: #{tpu_custom_call.1} parent=31 // pred_check_branch
          %189 = sbr.rel (%p187) target = $region36
        $region35: #{tpu_custom_call.1} parent=31 // pred_region
          %190 = dma.done %s183, 640
        $region36: #{tpu_custom_call.1} parent=31 // pred_fallthru
          _
        // Predicated region
        $region37: #{tpu_custom_call.1} parent=31 // pred_check
          %p191 = pneg %p64
        $region38: #{tpu_custom_call.1} parent=31 // pred_check_branch
          %193 = sbr.rel (%p191) target = $region40
        $region39: #{tpu_custom_call.1} parent=31 // pred_region
          %194 = dma.done [#allocation7], 6400
        $region40: #{tpu_custom_call.1} parent=31 // pred_fallthru
          _
        // Predicated region
        $region41: #{tpu_custom_call.1} parent=31 // pred_check
          %p195 = pneg %p85
        $region42: #{tpu_custom_call.1} parent=31 // pred_check_branch
          %197 = sbr.rel (%p195) target = $region44
        $region43: #{tpu_custom_call.1} parent=31 // pred_region
          %198 = dma.done [#allocation5], 16
        $region44: #{tpu_custom_call.1} parent=31 // pred_fallthru
          _
        %199 = sfence
        %s200 = sand.u32 %s30, 1
        %s201 = scalar_lea.sflag [#allocation3], %s200
        %s202 = sand.u32 %s30, 1
        %s203 = smul.addr %s202, 40
        %s204 = scalar_lea.vmem [#allocation2], %s203
        %p205 = pneg %p43
        %p206 = pneg %p40
        %p207 = pneg %p64
        %p208 = pneg %p61
        %p209 = pneg %p85
        %p210 = pneg %p82
        %p211 = pneg %p111
        %p212 = pneg %p108
        %s213 = sand.u32 %s98, 1
        %s214 = scalar_lea.sflag [#allocation4], %s213
        %s215 = sand.u32 %s98, 1
        %s216 = smul.addr %s215, 8
        %s217 = scalar_lea.vmem [#allocation9], %s216
        %v218 = vld [vmem:[%s186] sm:$0xff]
        %v219 = vld [vmem:[#allocation6] sm:$0xff]
        %v220 = vld [vmem:[#allocation6 + $0x8] sm:$0xff]
        %v221 = vld [vmem:[#allocation6 + $0x10] sm:$0xff]
        %v222 = vld [vmem:[#allocation6 + $0x18] sm:$0xff]
        %v223 = vld [vmem:[#allocation6 + $0x20] sm:$0xff]
        %v224 = vld [vmem:[#allocation6 + $0x28] sm:$0xff]
        %v225 = vld [vmem:[#allocation6 + $0x30] sm:$0xff]
        %v226 = vld [vmem:[#allocation6 + $0x38] sm:$0xff]
        %v227 = vld [vmem:[#allocation6 + $0x40] sm:$0xff]
        %v228 = vld [vmem:[#allocation6 + $0x48] sm:$0xff]
        %v229 = vld [vmem:[#allocation6 + $0x50] sm:$0xff]
        %v230 = vld [vmem:[#allocation6 + $0x58] sm:$0xff]
        %v231 = vld [vmem:[#allocation6 + $0x60] sm:$0xff]
        %v232 = vld [vmem:[#allocation6 + $0x68] sm:$0xff]
        %v233 = vld [vmem:[#allocation6 + $0x70] sm:$0xff]
        %v234 = vld [vmem:[#allocation6 + $0x78] sm:$0xff]
        %v235 = vld [vmem:[#allocation6 + $0x150] sm:$0xff]
        %236 = vmatprep.subr.mxu0 0.0
        %237 = vmatpush1.msra.mxu0 %v219
        %238 = vmatprep.subr.mxu0 0.0
        %239 = vmatpush1.msra.mxu0 %v220
        %240 = vmatprep.subr.mxu0 0.0
        %241 = vmatpush1.msra.mxu0 %v221
        %242 = vmatprep.subr.mxu0 0.0
        %243 = vmatpush1.msra.mxu0 %v222
        %244 = vmatprep.subr.mxu0 0.0
        %245 = vmatpush1.msra.mxu0 %v223
        %246 = vmatprep.subr.mxu0 0.0
        %247 = vmatpush1.msra.mxu0 %v224
        %248 = vmatprep.subr.mxu0 0.0
        %249 = vmatpush1.msra.mxu0 %v225
        %250 = vmatprep.subr.mxu0 0.0
        %251 = vmatpush1.msra.mxu0 %v226
        %252 = vmatprep.subr.mxu0 0.0
        %253 = vmatpush1.msra.mxu0 %v227
        %254 = vmatprep.subr.mxu0 0.0
        %255 = vmatpush1.msra.mxu0 %v228
        %256 = vmatprep.subr.mxu0 0.0
        %257 = vmatpush1.msra.mxu0 %v229
        %258 = vmatprep.subr.mxu0 0.0
        %259 = vmatpush1.msra.mxu0 %v230
        %260 = vmatprep.subr.mxu0 0.0
        %261 = vmatpush1.msra.mxu0 %v231
        %262 = vmatprep.subr.mxu0 0.0
        %263 = vmatpush1.msra.mxu0 %v232
        %264 = vmatprep.subr.mxu0 0.0
        %265 = vmatpush1.msra.mxu0 %v233
        %266 = vmatprep.subr.mxu0 0.0
        %267 = vmatpush1.msra.mxu0 %v234
        %268 = vmatprep.subr.mxu0 0.0
        %269 = vmatpush1.msra.mxu0 0.0
        %270 = vmatprep.subr.mxu0 0.0
        %271 = vmatpush1.msra.mxu0 0.0
        %272 = vmatprep.subr.mxu0 0.0
        %273 = vmatpush1.msra.mxu0 0.0
        %274 = vmatprep.subr.mxu0 0.0
        %275 = vmatpush1.msra.mxu0 0.0
        %276 = vmatprep.subr.mxu0 0.0
        %277 = vmatpush1.msra.mxu0 0.0
        %278 = vmatprep.subr.mxu0 0.0
        %279 = vmatpush1.msra.mxu0 0.0
        %280 = vmatprep.subr.mxu0 0.0
        %281 = vmatpush1.msra.mxu0 0.0
        %282 = vmatprep.subr.mxu0 0.0
        %283 = vmatpush1.msra.mxu0 0.0
        %284 = vmatprep.subr.mxu0 0.0
        %285 = vmatpush1.msra.mxu0 0.0
        %286 = vmatprep.subr.mxu0 0.0
        %287 = vmatpush1.msra.mxu0 0.0
        %288 = vmatprep.subr.mxu0 0.0
        %289 = vmatpush1.msra.mxu0 0.0
        %290 = vmatprep.subr.mxu0 0.0
        %291 = vmatpush1.msra.mxu0 0.0
        %292 = vmatprep.subr.mxu0 0.0
        %293 = vmatpush1.msra.mxu0 0.0
        %294 = vmatprep.subr.mxu0 0.0
        %295 = vmatpush1.msra.mxu0 0.0
        %296 = vmatprep.subr.mxu0 0.0
        %297 = vmatpush1.msra.mxu0 0.0
        %298 = vmatprep.subr.mxu0 0.0
        %299 = vmatpush1.msra.mxu0 0.0
        %300 = vmatprep.mubr.f32.mxu0 0.0
        %301 = vmatmul.mubr.f32.gmra.mrb[0].mxu0 %v218
        %v302 = vpop.f32.mrb[0].mxu0
        %v303 = vadd.f32 %v235, %v302
        %v304 = vpop.f32.mrb[0].mxu0
        %305 = vdwg.mxu0
        %v306 = vld [vmem:[#allocation6 + $0x158] sm:$0xff]
        %v307 = vld [vmem:[#allocation6 + $0x160] sm:$0xff]
        %vm308 = vcmask 261120
        %v309 = vsel %vm308, %v303, 0.0
        %v310 = vrot.slane %v309, 4
        %v311 = vadd.f32 %v309, %v310
        %v312 = vrot.slane %v311, 2
        %v313 = vadd.f32 %v311, %v312
        %v314 = vrot.slane %v313, 1
        %v315 = vadd.f32 %v313, %v314
        %v316 = vmul.f32 %v303, %v303
        %v317 = vsel %vm308, %v316, 0.0
        %v318 = vrot.slane %v317, 4
        %v319 = vadd.f32 %v317, %v318
        %v320 = vrot.slane %v319, 2
        %v321 = vadd.f32 %v319, %v320
        %v322 = vrot.slane %v321, 1
        %v323 = vadd.f32 %v321, %v322
        %v324 = vmul.f32 %v315, 0.125
        %v325 = vmul.f32 %v323, 0.125
        %v326 = vmul.f32 %v324, %v324
        %v327 = vsub.f32 %v325, %v326
        %v328 = vmax.f32 %v327, 0.0
        %v329 = vsub.f32 %v303, %v324
        %v330 = vadd.f32 %v328, 1e-05
        %v331 = vrsqrt.pop %v330
        %v332 = vmul.f32 %v329, %v331
        %v333 = vmul.f32 %v332, %v306
        %v334 = vadd.f32 %v333, %v307
        %v335 = vmul.f32 %v334, 0.01
        %v336 = vmax.f32 %v334, %v335
        %v337 = vld [vmem:[#allocation6 + $0x100] sm:$0xff]
        %v338 = vld [vmem:[#allocation6 + $0x108] sm:$0xff]
        %v339 = vld [vmem:[#allocation6 + $0x110] sm:$0xff]
        %v340 = vld [vmem:[#allocation6 + $0x118] sm:$0xff]
        %v341 = vld [vmem:[#allocation6 + $0x168] sm:$0xff]
        %v343 = vsel %vm308, %v336, 0
        %345 = vmatprep.subr.mxu0 0.0
        %346 = vmatpush1.msra.mxu0 %v337
        %347 = vmatprep.subr.mxu0 0.0
        %348 = vmatpush1.msra.mxu0 %v338
        %349 = vmatprep.subr.mxu0 0.0
        %350 = vmatpush1.msra.mxu0 %v339
        %351 = vmatprep.subr.mxu0 0.0
        %352 = vmatpush1.msra.mxu0 %v340
        %353 = vmatprep.subr.mxu0 0.0
        %354 = vmatpush1.msra.mxu0 0.0
        %355 = vmatprep.subr.mxu0 0.0
        %356 = vmatpush1.msra.mxu0 0.0
        %357 = vmatprep.subr.mxu0 0.0
        %358 = vmatpush1.msra.mxu0 0.0
        %359 = vmatprep.subr.mxu0 0.0
        %360 = vmatpush1.msra.mxu0 0.0
        %361 = vmatprep.subr.mxu0 0.0
        %362 = vmatpush1.msra.mxu0 0.0
        %363 = vmatprep.subr.mxu0 0.0
        %364 = vmatpush1.msra.mxu0 0.0
        %365 = vmatprep.subr.mxu0 0.0
        %366 = vmatpush1.msra.mxu0 0.0
        %367 = vmatprep.subr.mxu0 0.0
        %368 = vmatpush1.msra.mxu0 0.0
        %369 = vmatprep.subr.mxu0 0.0
        %370 = vmatpush1.msra.mxu0 0.0
        %371 = vmatprep.subr.mxu0 0.0
        %372 = vmatpush1.msra.mxu0 0.0
        %373 = vmatprep.subr.mxu0 0.0
        %374 = vmatpush1.msra.mxu0 0.0
        %375 = vmatprep.subr.mxu0 0.0
        %376 = vmatpush1.msra.mxu0 0.0
        %377 = vmatprep.subr.mxu0 0.0
        %378 = vmatpush1.msra.mxu0 0.0
        %379 = vmatprep.subr.mxu0 0.0
        %380 = vmatpush1.msra.mxu0 0.0
        %381 = vmatprep.subr.mxu0 0.0
        %382 = vmatpush1.msra.mxu0 0.0
        %383 = vmatprep.subr.mxu0 0.0
        %384 = vmatpush1.msra.mxu0 0.0
        %385 = vmatprep.subr.mxu0 0.0
        %386 = vmatpush1.msra.mxu0 0.0
        %387 = vmatprep.subr.mxu0 0.0
        %388 = vmatpush1.msra.mxu0 0.0
        %389 = vmatprep.subr.mxu0 0.0
        %390 = vmatpush1.msra.mxu0 0.0
        %391 = vmatprep.subr.mxu0 0.0
        %392 = vmatpush1.msra.mxu0 0.0
        %393 = vmatprep.subr.mxu0 0.0
        %394 = vmatpush1.msra.mxu0 0.0
        %395 = vmatprep.subr.mxu0 0.0
        %396 = vmatpush1.msra.mxu0 0.0
        %397 = vmatprep.subr.mxu0 0.0
        %398 = vmatpush1.msra.mxu0 0.0
        %399 = vmatprep.subr.mxu0 0.0
        %400 = vmatpush1.msra.mxu0 0.0
        %401 = vmatprep.subr.mxu0 0.0
        %402 = vmatpush1.msra.mxu0 0.0
        %403 = vmatprep.subr.mxu0 0.0
        %404 = vmatpush1.msra.mxu0 0.0
        %405 = vmatprep.subr.mxu0 0.0
        %406 = vmatpush1.msra.mxu0 0.0
        %407 = vmatprep.subr.mxu0 0.0
        %408 = vmatpush1.msra.mxu0 0.0
        %409 = vmatprep.mubr.f32.mxu0 0.0
        %410 = vmatmul.mubr.f32.gmra.mrb[0].mxu0 %v343
        %v411 = vpop.f32.mrb[0].mxu0
        %v412 = vadd.f32 %v341, %v411
        %v413 = vpop.f32.mrb[0].mxu0
        %414 = vdwg.mxu0
        %v415 = vld [vmem:[#allocation6 + $0x170] sm:$0xff]
        %v416 = vld [vmem:[#allocation6 + $0x178] sm:$0xff]
        %v417 = vsel %vm308, %v412, 0.0
        %v418 = vrot.slane %v417, 4
        %v419 = vadd.f32 %v417, %v418
        %v420 = vrot.slane %v419, 2
        %v421 = vadd.f32 %v419, %v420
        %v422 = vrot.slane %v421, 1
        %v423 = vadd.f32 %v421, %v422
        %v424 = vmul.f32 %v412, %v412
        %v425 = vsel %vm308, %v424, 0.0
        %v426 = vrot.slane %v425, 4
        %v427 = vadd.f32 %v425, %v426
        %v428 = vrot.slane %v427, 2
        %v429 = vadd.f32 %v427, %v428
        %v430 = vrot.slane %v429, 1
        %v431 = vadd.f32 %v429, %v430
        %v432 = vmul.f32 %v423, 0.125
        %v433 = vmul.f32 %v431, 0.125
        %v434 = vmul.f32 %v432, %v432
        %v435 = vsub.f32 %v433, %v434
        %v436 = vmax.f32 %v435, 0.0
        %v437 = vsub.f32 %v412, %v432
        %v438 = vadd.f32 %v436, 1e-05
        %v439 = vrsqrt.pop %v438
        %v440 = vmul.f32 %v437, %v439
        %v441 = vmul.f32 %v440, %v415
        %v442 = vadd.f32 %v441, %v416
        %v443 = vmul.f32 %v442, 0.01
        %v444 = vmax.f32 %v442, %v443
        %v445 = vld [vmem:[%s186 + $0x8] sm:$0xff]
        %v446 = vld [vmem:[#allocation6 + $0x80] sm:$0xff]
        %v447 = vld [vmem:[#allocation6 + $0x88] sm:$0xff]
        %v448 = vld [vmem:[#allocation6 + $0x90] sm:$0xff]
        %v449 = vld [vmem:[#allocation6 + $0x98] sm:$0xff]
        %v450 = vld [vmem:[#allocation6 + $0xa0] sm:$0xff]
        %v451 = vld [vmem:[#allocation6 + $0xa8] sm:$0xff]
        %v452 = vld [vmem:[#allocation6 + $0xb0] sm:$0xff]
        %v453 = vld [vmem:[#allocation6 + $0xb8] sm:$0xff]
        %v454 = vld [vmem:[#allocation6 + $0xc0] sm:$0xff]
        %v455 = vld [vmem:[#allocation6 + $0xc8] sm:$0xff]
        %v456 = vld [vmem:[#allocation6 + $0xd0] sm:$0xff]
        %v457 = vld [vmem:[#allocation6 + $0xd8] sm:$0xff]
        %v458 = vld [vmem:[#allocation6 + $0xe0] sm:$0xff]
        %v459 = vld [vmem:[#allocation6 + $0xe8] sm:$0xff]
        %v460 = vld [vmem:[#allocation6 + $0xf0] sm:$0xff]
        %v461 = vld [vmem:[#allocation6 + $0xf8] sm:$0xff]
        %v462 = vld [vmem:[#allocation6 + $0x180] sm:$0xff]
        %463 = vmatprep.subr.mxu0 0.0
        %464 = vmatpush1.msra.mxu0 %v446
        %465 = vmatprep.subr.mxu0 0.0
        %466 = vmatpush1.msra.mxu0 %v447
        %467 = vmatprep.subr.mxu0 0.0
        %468 = vmatpush1.msra.mxu0 %v448
        %469 = vmatprep.subr.mxu0 0.0
        %470 = vmatpush1.msra.mxu0 %v449
        %471 = vmatprep.subr.mxu0 0.0
        %472 = vmatpush1.msra.mxu0 %v450
        %473 = vmatprep.subr.mxu0 0.0
        %474 = vmatpush1.msra.mxu0 %v451
        %475 = vmatprep.subr.mxu0 0.0
        %476 = vmatpush1.msra.mxu0 %v452
        %477 = vmatprep.subr.mxu0 0.0
        %478 = vmatpush1.msra.mxu0 %v453
        %479 = vmatprep.subr.mxu0 0.0
        %480 = vmatpush1.msra.mxu0 %v454
        %481 = vmatprep.subr.mxu0 0.0
        %482 = vmatpush1.msra.mxu0 %v455
        %483 = vmatprep.subr.mxu0 0.0
        %484 = vmatpush1.msra.mxu0 %v456
        %485 = vmatprep.subr.mxu0 0.0
        %486 = vmatpush1.msra.mxu0 %v457
        %487 = vmatprep.subr.mxu0 0.0
        %488 = vmatpush1.msra.mxu0 %v458
        %489 = vmatprep.subr.mxu0 0.0
        %490 = vmatpush1.msra.mxu0 %v459
        %491 = vmatprep.subr.mxu0 0.0
        %492 = vmatpush1.msra.mxu0 %v460
        %493 = vmatprep.subr.mxu0 0.0
        %494 = vmatpush1.msra.mxu0 %v461
        %495 = vmatprep.subr.mxu0 0.0
        %496 = vmatpush1.msra.mxu0 0.0
        %497 = vmatprep.subr.mxu0 0.0
        %498 = vmatpush1.msra.mxu0 0.0
        %499 = vmatprep.subr.mxu0 0.0
        %500 = vmatpush1.msra.mxu0 0.0
        %501 = vmatprep.subr.mxu0 0.0
        %502 = vmatpush1.msra.mxu0 0.0
        %503 = vmatprep.subr.mxu0 0.0
        %504 = vmatpush1.msra.mxu0 0.0
        %505 = vmatprep.subr.mxu0 0.0
        %506 = vmatpush1.msra.mxu0 0.0
        %507 = vmatprep.subr.mxu0 0.0
        %508 = vmatpush1.msra.mxu0 0.0
        %509 = vmatprep.subr.mxu0 0.0
        %510 = vmatpush1.msra.mxu0 0.0
        %511 = vmatprep.subr.mxu0 0.0
        %512 = vmatpush1.msra.mxu0 0.0
        %513 = vmatprep.subr.mxu0 0.0
        %514 = vmatpush1.msra.mxu0 0.0
        %515 = vmatprep.subr.mxu0 0.0
        %516 = vmatpush1.msra.mxu0 0.0
        %517 = vmatprep.subr.mxu0 0.0
        %518 = vmatpush1.msra.mxu0 0.0
        %519 = vmatprep.subr.mxu0 0.0
        %520 = vmatpush1.msra.mxu0 0.0
        %521 = vmatprep.subr.mxu0 0.0
        %522 = vmatpush1.msra.mxu0 0.0
        %523 = vmatprep.subr.mxu0 0.0
        %524 = vmatpush1.msra.mxu0 0.0
        %525 = vmatprep.subr.mxu0 0.0
        %526 = vmatpush1.msra.mxu0 0.0
        %527 = vmatprep.mubr.f32.mxu0 0.0
        %528 = vmatmul.mubr.f32.gmra.mrb[0].mxu0 %v445
        %v529 = vpop.f32.mrb[0].mxu0
        %v530 = vadd.f32 %v462, %v529
        %v531 = vpop.f32.mrb[0].mxu0
        %532 = vdwg.mxu0
        %v533 = vld [vmem:[%s186 + $0x10] sm:$0xff]
        %v534 = vld [vmem:[%s186 + $0x18] sm:$0xff]
        %v535 = vld [vmem:[%s186 + $0x20] sm:$0xff]
        %v536 = vlaneseq
        %v537 = vand.u32 %v536, 127
        %s538 = sld [smem:[#allocation8]]
        %v539 = vstv %s538
        %v540 = vmul.f32 %v533, %v539
        %s541 = sld [smem:[#allocation8 + $0x1]]
        %v542 = vstv %s541
        %v543 = vmul.f32 %v534, %v542
        %v544 = vadd.f32 %v540, %v543
        %s545 = sld [smem:[#allocation8 + $0x2]]
        %v546 = vstv %s545
        %v547 = vmul.f32 %v535, %v546
        %v548 = vadd.f32 %v544, %v547
        %vm549 = vcmask 113664
        %v550 = vsel %vm549, %v548, -inf
        %551 = vmax.xlane.f32.xlu0 %v550
        %v552 = vpop.xlane.xlu0 %551
        %s553 = sld [smem:[#allocation8 + $0x3]]
        %v554 = vstv %s553
        %v555 = vadd.f32 %v552, %v554
        %vm556 = vcmp.eq.s32.totalorder %v537, 0
        %v557 = vsel %vm556, %v555, 0.0
        %v558 = vadd.f32 %v557, 0.0
        %s559 = sld [smem:[#allocation8 + $0x4]]
        %v560 = vstv %s559
        %v561 = vmul.f32 %v533, %v560
        %s562 = sld [smem:[#allocation8 + $0x5]]
        %v563 = vstv %s562
        %v564 = vmul.f32 %v534, %v563
        %v565 = vadd.f32 %v561, %v564
        %s566 = sld [smem:[#allocation8 + $0x6]]
        %v567 = vstv %s566
        %v568 = vmul.f32 %v535, %v567
        %v569 = vadd.f32 %v565, %v568
        %v570 = vsel %vm549, %v569, -inf
        %571 = vmax.xlane.f32.xlu0 %v570
        %v572 = vpop.xlane.xlu0 %571
        %s573 = sld [smem:[#allocation8 + $0x7]]
        %v574 = vstv %s573
        %v575 = vadd.f32 %v572, %v574
        %vm576 = vcmp.eq.s32.totalorder %v537, 1
        %v577 = vsel %vm576, %v575, 0.0
        %v578 = vadd.f32 %v558, %v577
        %s579 = sld [smem:[#allocation8 + $0x8]]
        %v580 = vstv %s579
        %v581 = vmul.f32 %v533, %v580
        %s582 = sld [smem:[#allocation8 + $0x9]]
        %v583 = vstv %s582
        %v584 = vmul.f32 %v534, %v583
        %v585 = vadd.f32 %v581, %v584
        %s586 = sld [smem:[#allocation8 + $0xa]]
        %v587 = vstv %s586
        %v588 = vmul.f32 %v535, %v587
        %v589 = vadd.f32 %v585, %v588
        %v590 = vsel %vm549, %v589, -inf
        %591 = vmax.xlane.f32.xlu0 %v590
        %v592 = vpop.xlane.xlu0 %591
        %s593 = sld [smem:[#allocation8 + $0xb]]
        %v594 = vstv %s593
        %v595 = vadd.f32 %v592, %v594
        %vm596 = vcmp.eq.s32.totalorder %v537, 2
        %v597 = vsel %vm596, %v595, 0.0
        %v598 = vadd.f32 %v578, %v597
        %s599 = sld [smem:[#allocation8 + $0xc]]
        %v600 = vstv %s599
        %v601 = vmul.f32 %v533, %v600
        %s602 = sld [smem:[#allocation8 + $0xd]]
        %v603 = vstv %s602
        %v604 = vmul.f32 %v534, %v603
        %v605 = vadd.f32 %v601, %v604
        %s606 = sld [smem:[#allocation8 + $0xe]]
        %v607 = vstv %s606
        %v608 = vmul.f32 %v535, %v607
        %v609 = vadd.f32 %v605, %v608
        %v610 = vsel %vm549, %v609, -inf
        %611 = vmax.xlane.f32.xlu0 %v610
        %v612 = vpop.xlane.xlu0 %611
        %s613 = sld [smem:[#allocation8 + $0xf]]
        %v614 = vstv %s613
        %v615 = vadd.f32 %v612, %v614
        %vm616 = vcmp.eq.s32.totalorder %v537, 3
        %v617 = vsel %vm616, %v615, 0.0
        %v618 = vadd.f32 %v598, %v617
        %v619 = vld [vmem:[#allocation6 + $0x120] sm:$0xff]
        %v620 = vld [vmem:[#allocation6 + $0x128] sm:$0xff]
        %v621 = vld [vmem:[#allocation6 + $0x130] sm:$0xff]
        %v622 = vld [vmem:[#allocation6 + $0x138] sm:$0xff]
        %v623 = vld [vmem:[#allocation6 + $0x140] sm:$0xff]
        %vm624 = vcmask 64512
        %v626 = vsel %vm624, %v618, 0
        %628 = vmatprep.subr.mxu0 0.0
        %629 = vmatpush1.msra.mxu0 %v623
        %630 = vmatprep.subr.mxu0 0.0
        %631 = vmatpush1.msra.mxu0 0.0
        %632 = vmatprep.subr.mxu0 0.0
        %633 = vmatpush1.msra.mxu0 0.0
        %634 = vmatprep.subr.mxu0 0.0
        %635 = vmatpush1.msra.mxu0 0.0
        %636 = vmatprep.subr.mxu0 0.0
        %637 = vmatpush1.msra.mxu0 0.0
        %638 = vmatprep.subr.mxu0 0.0
        %639 = vmatpush1.msra.mxu0 0.0
        %640 = vmatprep.subr.mxu0 0.0
        %641 = vmatpush1.msra.mxu0 0.0
        %642 = vmatprep.subr.mxu0 0.0
        %643 = vmatpush1.msra.mxu0 0.0
        %644 = vmatprep.subr.mxu0 0.0
        %645 = vmatpush1.msra.mxu0 0.0
        %646 = vmatprep.subr.mxu0 0.0
        %647 = vmatpush1.msra.mxu0 0.0
        %648 = vmatprep.subr.mxu0 0.0
        %649 = vmatpush1.msra.mxu0 0.0
        %650 = vmatprep.subr.mxu0 0.0
        %651 = vmatpush1.msra.mxu0 0.0
        %652 = vmatprep.subr.mxu0 0.0
        %653 = vmatpush1.msra.mxu0 0.0
        %654 = vmatprep.subr.mxu0 0.0
        %655 = vmatpush1.msra.mxu0 0.0
        %656 = vmatprep.subr.mxu0 0.0
        %657 = vmatpush1.msra.mxu0 0.0
        %658 = vmatprep.subr.mxu0 0.0
        %659 = vmatpush1.msra.mxu0 0.0
        %660 = vmatprep.subr.mxu0 0.0
        %661 = vmatpush1.msra.mxu0 0.0
        %662 = vmatprep.subr.mxu0 0.0
        %663 = vmatpush1.msra.mxu0 0.0
        %664 = vmatprep.subr.mxu0 0.0
        %665 = vmatpush1.msra.mxu0 0.0
        %666 = vmatprep.subr.mxu0 0.0
        %667 = vmatpush1.msra.mxu0 0.0
        %668 = vmatprep.subr.mxu0 0.0
        %669 = vmatpush1.msra.mxu0 0.0
        %670 = vmatprep.subr.mxu0 0.0
        %671 = vmatpush1.msra.mxu0 0.0
        %672 = vmatprep.subr.mxu0 0.0
        %673 = vmatpush1.msra.mxu0 0.0
        %674 = vmatprep.subr.mxu0 0.0
        %675 = vmatpush1.msra.mxu0 0.0
        %676 = vmatprep.subr.mxu0 0.0
        %677 = vmatpush1.msra.mxu0 0.0
        %678 = vmatprep.subr.mxu0 0.0
        %679 = vmatpush1.msra.mxu0 0.0
        %680 = vmatprep.subr.mxu0 0.0
        %681 = vmatpush1.msra.mxu0 0.0
        %682 = vmatprep.subr.mxu0 0.0
        %683 = vmatpush1.msra.mxu0 0.0
        %684 = vmatprep.subr.mxu0 0.0
        %685 = vmatpush1.msra.mxu0 0.0
        %686 = vmatprep.subr.mxu0 0.0
        %687 = vmatpush1.msra.mxu0 0.0
        %688 = vmatprep.subr.mxu0 0.0
        %689 = vmatpush1.msra.mxu0 0.0
        %690 = vmatprep.subr.mxu0 0.0
        %691 = vmatpush1.msra.mxu0 0.0
        %692 = vmatprep.mubr.f32.mxu0 0.0
        %693 = vmatmul.mubr.f32.gmra.mrb[0].mxu0 %v626
        %v694 = vpop.f32.mrb[0].mxu0
        %v695 = vadd.f32 0.0, %v694
        %v696 = vpop.f32.mrb[0].mxu0
        %697 = vdwg.mxu0
        %v699 = vsel %vm308, %v444, 0
        %701 = vmatprep.subr.mxu0 0.0
        %702 = vmatpush1.msra.mxu0 %v619
        %703 = vmatprep.subr.mxu0 0.0
        %704 = vmatpush1.msra.mxu0 %v620
        %705 = vmatprep.subr.mxu0 0.0
        %706 = vmatpush1.msra.mxu0 %v621
        %707 = vmatprep.subr.mxu0 0.0
        %708 = vmatpush1.msra.mxu0 %v622
        %709 = vmatprep.subr.mxu0 0.0
        %710 = vmatpush1.msra.mxu0 0.0
        %711 = vmatprep.subr.mxu0 0.0
        %712 = vmatpush1.msra.mxu0 0.0
        %713 = vmatprep.subr.mxu0 0.0
        %714 = vmatpush1.msra.mxu0 0.0
        %715 = vmatprep.subr.mxu0 0.0
        %716 = vmatpush1.msra.mxu0 0.0
        %717 = vmatprep.subr.mxu0 0.0
        %718 = vmatpush1.msra.mxu0 0.0
        %719 = vmatprep.subr.mxu0 0.0
        %720 = vmatpush1.msra.mxu0 0.0
        %721 = vmatprep.subr.mxu0 0.0
        %722 = vmatpush1.msra.mxu0 0.0
        %723 = vmatprep.subr.mxu0 0.0
        %724 = vmatpush1.msra.mxu0 0.0
        %725 = vmatprep.subr.mxu0 0.0
        %726 = vmatpush1.msra.mxu0 0.0
        %727 = vmatprep.subr.mxu0 0.0
        %728 = vmatpush1.msra.mxu0 0.0
        %729 = vmatprep.subr.mxu0 0.0
        %730 = vmatpush1.msra.mxu0 0.0
        %731 = vmatprep.subr.mxu0 0.0
        %732 = vmatpush1.msra.mxu0 0.0
        %733 = vmatprep.subr.mxu0 0.0
        %734 = vmatpush1.msra.mxu0 0.0
        %735 = vmatprep.subr.mxu0 0.0
        %736 = vmatpush1.msra.mxu0 0.0
        %737 = vmatprep.subr.mxu0 0.0
        %738 = vmatpush1.msra.mxu0 0.0
        %739 = vmatprep.subr.mxu0 0.0
        %740 = vmatpush1.msra.mxu0 0.0
        %741 = vmatprep.subr.mxu0 0.0
        %742 = vmatpush1.msra.mxu0 0.0
        %743 = vmatprep.subr.mxu0 0.0
        %744 = vmatpush1.msra.mxu0 0.0
        %745 = vmatprep.subr.mxu0 0.0
        %746 = vmatpush1.msra.mxu0 0.0
        %747 = vmatprep.subr.mxu0 0.0
        %748 = vmatpush1.msra.mxu0 0.0
        %749 = vmatprep.subr.mxu0 0.0
        %750 = vmatpush1.msra.mxu0 0.0
        %751 = vmatprep.subr.mxu0 0.0
        %752 = vmatpush1.msra.mxu0 0.0
        %753 = vmatprep.subr.mxu0 0.0
        %754 = vmatpush1.msra.mxu0 0.0
        %755 = vmatprep.subr.mxu0 0.0
        %756 = vmatpush1.msra.mxu0 0.0
        %757 = vmatprep.subr.mxu0 0.0
        %758 = vmatpush1.msra.mxu0 0.0
        %759 = vmatprep.subr.mxu0 0.0
        %760 = vmatpush1.msra.mxu0 0.0
        %761 = vmatprep.subr.mxu0 0.0
        %762 = vmatpush1.msra.mxu0 0.0
        %763 = vmatprep.subr.mxu0 0.0
        %764 = vmatpush1.msra.mxu0 0.0
        %765 = vmatprep.mubr.f32.mxu0 0.0
        %766 = vmatmul.mubr.f32.gmra.mrb[0].mxu0 %v699
        %v767 = vpop.f32.mrb[0].mxu0
        %v768 = vadd.f32 %v695, %v767
        %v769 = vpop.f32.mrb[0].mxu0
        %770 = vdwg.mxu0
        %v771 = vld [vmem:[#allocation6 + $0x148] sm:$0xff]
        %v773 = vsel %vm624, %v530, 0
        %775 = vmatprep.subr.mxu0 0.0
        %776 = vmatpush1.msra.mxu0 %v771
        %777 = vmatprep.subr.mxu0 0.0
        %778 = vmatpush1.msra.mxu0 0.0
        %779 = vmatprep.subr.mxu0 0.0
        %780 = vmatpush1.msra.mxu0 0.0
        %781 = vmatprep.subr.mxu0 0.0
        %782 = vmatpush1.msra.mxu0 0.0
        %783 = vmatprep.subr.mxu0 0.0
        %784 = vmatpush1.msra.mxu0 0.0
        %785 = vmatprep.subr.mxu0 0.0
        %786 = vmatpush1.msra.mxu0 0.0
        %787 = vmatprep.subr.mxu0 0.0
        %788 = vmatpush1.msra.mxu0 0.0
        %789 = vmatprep.subr.mxu0 0.0
        %790 = vmatpush1.msra.mxu0 0.0
        %791 = vmatprep.subr.mxu0 0.0
        %792 = vmatpush1.msra.mxu0 0.0
        %793 = vmatprep.subr.mxu0 0.0
        %794 = vmatpush1.msra.mxu0 0.0
        %795 = vmatprep.subr.mxu0 0.0
        %796 = vmatpush1.msra.mxu0 0.0
        %797 = vmatprep.subr.mxu0 0.0
        %798 = vmatpush1.msra.mxu0 0.0
        %799 = vmatprep.subr.mxu0 0.0
        %800 = vmatpush1.msra.mxu0 0.0
        %801 = vmatprep.subr.mxu0 0.0
        %802 = vmatpush1.msra.mxu0 0.0
        %803 = vmatprep.subr.mxu0 0.0
        %804 = vmatpush1.msra.mxu0 0.0
        %805 = vmatprep.subr.mxu0 0.0
        %806 = vmatpush1.msra.mxu0 0.0
        %807 = vmatprep.subr.mxu0 0.0
        %808 = vmatpush1.msra.mxu0 0.0
        %809 = vmatprep.subr.mxu0 0.0
        %810 = vmatpush1.msra.mxu0 0.0
        %811 = vmatprep.subr.mxu0 0.0
        %812 = vmatpush1.msra.mxu0 0.0
        %813 = vmatprep.subr.mxu0 0.0
        %814 = vmatpush1.msra.mxu0 0.0
        %815 = vmatprep.subr.mxu0 0.0
        %816 = vmatpush1.msra.mxu0 0.0
        %817 = vmatprep.subr.mxu0 0.0
        %818 = vmatpush1.msra.mxu0 0.0
        %819 = vmatprep.subr.mxu0 0.0
        %820 = vmatpush1.msra.mxu0 0.0
        %821 = vmatprep.subr.mxu0 0.0
        %822 = vmatpush1.msra.mxu0 0.0
        %823 = vmatprep.subr.mxu0 0.0
        %824 = vmatpush1.msra.mxu0 0.0
        %825 = vmatprep.subr.mxu0 0.0
        %826 = vmatpush1.msra.mxu0 0.0
        %827 = vmatprep.subr.mxu0 0.0
        %828 = vmatpush1.msra.mxu0 0.0
        %829 = vmatprep.subr.mxu0 0.0
        %830 = vmatpush1.msra.mxu0 0.0
        %831 = vmatprep.subr.mxu0 0.0
        %832 = vmatpush1.msra.mxu0 0.0
        %833 = vmatprep.subr.mxu0 0.0
        %834 = vmatpush1.msra.mxu0 0.0
        %835 = vmatprep.subr.mxu0 0.0
        %836 = vmatpush1.msra.mxu0 0.0
        %837 = vmatprep.subr.mxu0 0.0
        %838 = vmatpush1.msra.mxu0 0.0
        %839 = vmatprep.mubr.f32.mxu0 0.0
        %840 = vmatmul.mubr.f32.gmra.mrb[0].mxu0 %v773
        %v841 = vpop.f32.mrb[0].mxu0
        %v842 = vadd.f32 0.0, %v841
        %v843 = vpop.f32.mrb[0].mxu0
        %844 = vdwg.mxu0
        %v845 = vadd.f32 %v768, %v842
        %v846 = vld [vmem:[#allocation6 + $0x188] sm:$0xff]
        %v847 = vadd.f32 %v845, %v846
        %v848 = vmul.f32 %v847, 0.01
        %v849 = vmax.f32 %v847, %v848
        %850 = vst [vmem:[%s217] sm:$0xff] %v849
        %s851 = sand.u32 %s98, 1
        %s852 = scalar_lea.sflag [#allocation4], %s851
        %s853 = sand.u32 %s98, 1
        %s854 = smul.addr %s853, 8
        %s855 = scalar_lea.vmem [#allocation9], %s854
        // Predicated region
        $region45: #{tpu_custom_call.1} parent=31 // pred_check
          %p856 = pneg %p108
        $region46: #{tpu_custom_call.1} parent=31 // pred_check_branch
          %858 = sbr.rel (%p856) target = $region48
        $region47: #{tpu_custom_call.1} parent=31 // pred_region
          %s860 = ssub.s32 128, 128
          %861 = vsyncadd %s852, %s860
          %s862 = smul.addr %s22, 128
          %s863 = scalar_lea.hbm %s3, %s862
          %s865 = sshll.u32 %s855, 4
          %s866 = int_to_ptr.vmem [resolvable:$true] %s865
          %868 = dma.vmem_to_hbm [thread:$0]  %s866, 128, %s863, %s852
        $region48: #{tpu_custom_call.1} parent=31 // pred_fallthru
          _
      $region32: #{tpu_custom_call.1} parent=5 // pred_fallthru
        _
      %p869 = scmp.le.s32.totalorder 2, %s17
      // Predicated region
      $region49: #{tpu_custom_call.1} parent=5 // pred_check
        %p870 = pneg %p869
      $region50: #{tpu_custom_call.1} parent=5 // pred_check_branch
        %872 = sbr.rel (%p870) target = $region52
      $region51: #{tpu_custom_call.1} parent=5 // pred_region
        %s873 = ssub.s32 %s17, 2
        // Predicated region
        $region53: #{tpu_custom_call.1} parent=51 // pred_check
          %p874 = pneg %p114
        $region54: #{tpu_custom_call.1} parent=51 // pred_check_branch
          %876 = sbr.rel (%p874) target = $region56
        $region55: #{tpu_custom_call.1} parent=51 // pred_region
          %s877 = sand.u32 %s99, 1
          %s878 = scalar_lea.sflag [#allocation4], %s877
          %s879 = sand.u32 %s99, 1
          %s880 = smul.addr %s879, 8
          %s881 = scalar_lea.vmem [#allocation9], %s880
          %882 = dma.done %s878, 128
        $region56: #{tpu_custom_call.1} parent=51 // pred_fallthru
          _
      $region52: #{tpu_custom_call.1} parent=5 // pred_fallthru
        _
    $region6: #{tpu_custom_call.1} parent=1 // loop_footer
      %s21 = sadd.s32 1, %s17
    $region7: #{tpu_custom_call.1} parent=1 // loop_footer_branch
      %16 = sbr.rel target = $region3
    $region8: #{tpu_custom_call.1} parent=1 // loop_exit
      _
    %883 = vsyncpa [#allocation3], 1
    %s884 = scalar_lea.sflag [#allocation3], 1
    %885 = vsyncpa %s884, 1
    %886 = vsyncpa [#allocation7], 1
    %887 = vsyncpa [#allocation4], 1
    %s888 = scalar_lea.sflag [#allocation4], 1
    %889 = vsyncpa %s888, 1
    %890 = vsyncpa [#allocation5], 1
    %s891 = scalar_lea.sflag [#allocation5], 1
    %892 = vsyncpa %s891, 1

</llo_original>
